<compile_context>
chip_gen: v7x
topology: tpu7x:2x2x1
jax: 0.10.0
libtpu: 0.0.40
codegen_flags: <defaults>
</compile_context>

<pallas_src>
import numpy as np
import jax
import jax.numpy as jnp
from jax.experimental import pallas as pl
from jax.experimental.pallas import tpu as pltpu

IN_DIM, HID_DIM, OUT_DIM = 32, 48, 64
HID_PAD = 128  # lane-dense padded hidden width (48 -> 128)


def _round_up(n, m):
    return ((n + m - 1) // m) * m


def linear_attention_kernel(x_ref, w1_ref, b1_ref, w2_ref, b2_ref, o_ref):
    # Fused linear1 -> relu -> linear2 -> relu on a (bm, 32) input tile.
    h = jnp.dot(x_ref[...], w1_ref[...],
                preferred_element_type=jnp.float32) + b1_ref[...]
    h = jnp.maximum(h, 0.0)                              # (bm, 128)
    a = jnp.dot(h, w2_ref[...],
                preferred_element_type=jnp.float32) + b2_ref[...]
    o_ref[...] = jnp.maximum(a, 0.0)                     # (bm, 64)


def make_linear_attention(W1, b1, W2, b2, *, block_b=4096):
    """Pad/transpose params once (device-resident) and return a jitted apply fn.

    W1: (48, 32), b1: (48,), W2: (64, 48), b2: (64,)  -- torch nn.Linear layout.
    """
    W1t = jnp.asarray(W1, jnp.float32).T  # (32, 48)
    W2t = jnp.asarray(W2, jnp.float32).T  # (48, 64)
    # W1 padded only on the hidden (output) axis: (32, 128).
    w1p = jnp.zeros((IN_DIM, HID_PAD), jnp.float32).at[:, :HID_DIM].set(W1t)
    b1p = jnp.zeros((1, HID_PAD), jnp.float32).at[0, :HID_DIM].set(
        jnp.asarray(b1, jnp.float32))
    # W2 padded only on the hidden (input) axis: (128, 64); output stays 64.
    w2p = jnp.zeros((HID_PAD, OUT_DIM), jnp.float32).at[:HID_DIM, :].set(W2t)
    b2p = jnp.asarray(b2, jnp.float32).reshape(1, OUT_DIM)
    params = jax.device_put((w1p, b1p, w2p, b2p))

    @jax.jit
    def apply(x):
        w1_p, b1_p, w2_p, b2_p = params
        x2 = x.reshape(x.shape[0], -1).astype(jnp.float32)  # x.squeeze(1)
        B = x2.shape[0]

        # Sublane-align the batch only (multiple of 8); ragged last grid block
        # is handled by Pallas (masked stores), wrapper keeps the [:B] slice.
        B8 = _round_up(B, 8)
        if B8 != B:
            x2 = jnp.pad(x2, ((0, B8 - B), (0, 0)))

        # Batch tile: large to amortize per-step overhead; capped at ceil(B/2)
        # so the parallel axis has >= 2 steps (both TensorCores on v7x).
        bm = min(block_b, max(8, _round_up(pl.cdiv(B8, 2), 8)))
        grid = pl.cdiv(B8, bm)

        out = pl.pallas_call(
            linear_attention_kernel,
            out_shape=jax.ShapeDtypeStruct((B8, OUT_DIM), jnp.float32),
            grid_spec=pltpu.PrefetchScalarGridSpec(
                num_scalar_prefetch=0,
                grid=(grid,),
                in_specs=[
                    pl.BlockSpec((bm, IN_DIM), lambda i: (i, 0)),     # x tile (native 32 wide)
                    pl.BlockSpec((IN_DIM, HID_PAD), lambda i: (0, 0)),  # W1 (VMEM-resident)
                    pl.BlockSpec((1, HID_PAD), lambda i: (0, 0)),     # b1
                    pl.BlockSpec((HID_PAD, OUT_DIM), lambda i: (0, 0)),  # W2 (VMEM-resident)
                    pl.BlockSpec((1, OUT_DIM), lambda i: (0, 0)),     # b2
                ],
                out_specs=pl.BlockSpec((bm, OUT_DIM), lambda i: (i, 0)),
            ),
            compiler_params=pltpu.CompilerParams(
                dimension_semantics=("parallel",)),
        )(x2, w1_p, b1_p, w2_p, b2_p)

        return out[:B]

    return apply


def reference_numpy(x, W1, b1, W2, b2):
    """Pure numpy reference matching the PyTorch LinearAttention forward."""
    x2 = np.asarray(x, np.float64).reshape(np.asarray(x).shape[0], -1)
    h = np.maximum(x2 @ np.asarray(W1, np.float64).T + np.asarray(b1, np.float64), 0.0)
    return np.maximum(h @ np.asarray(W2, np.float64).T + np.asarray(b2, np.float64), 0.0)


if __name__ == "__main__":
    key = jax.random.PRNGKey(0)
    k = jax.random.split(key, 5)
    # Deterministic synthetic parameters (torch nn.Linear layout: (out, in)).
    W1 = jax.random.normal(k[0], (HID_DIM, IN_DIM), jnp.float32) * 0.2
    b1 = jax.random.normal(k[1], (HID_DIM,), jnp.float32) * 0.1
    W2 = jax.random.normal(k[2], (OUT_DIM, HID_DIM), jnp.float32) * 0.2
    b2 = jax.random.normal(k[3], (OUT_DIM,), jnp.float32) * 0.1

    # Input shaped as the forward implies: (B, 1, 32), squeezed inside.
    x = jax.random.normal(k[4], (2, 1, IN_DIM), jnp.float32)

    attn = make_linear_attention(W1, b1, W2, b2)
    out = jax.block_until_ready(attn(x))
    assert out.shape == (2, OUT_DIM)

    ref = reference_numpy(x, W1, b1, W2, b2)
    np.testing.assert_allclose(np.asarray(out, np.float64), ref, rtol=2e-2, atol=2e-2)
    print("KERNEL_OK")
</pallas_src>

<mosaic_0001>
module attributes {stable_mosaic.version = 11 : i64} {
  func.func @linear_attention_kernel(%arg0: i32, %arg1: memref<8x32xf32, #tpu.memory_space<vmem>>, %arg2: memref<32x128xf32, #tpu.memory_space<vmem>>, %arg3: memref<1x128xf32, #tpu.memory_space<vmem>>, %arg4: memref<128x64xf32, #tpu.memory_space<vmem>>, %arg5: memref<1x64xf32, #tpu.memory_space<vmem>>, %arg6: memref<8x64xf32, #tpu.memory_space<vmem>>) attributes {dimension_semantics = [#tpu.dimension_semantics<parallel>], iteration_bounds = array<i64: 1>, scalar_prefetch = 0 : i64, scratch_operands = 0 : i64, tpu.core_type = #tpu.core_type<tc>, window_params = [{transform_indices = @transform_0, window_bounds = array<i64: 8, 32>}, {pipeline_mode = #tpu.pipeline_mode<synchronous>, transform_indices = @transform_1, window_bounds = array<i64: 32, 128>}, {pipeline_mode = #tpu.pipeline_mode<synchronous>, transform_indices = @transform_2, window_bounds = array<i64: 1, 128>}, {pipeline_mode = #tpu.pipeline_mode<synchronous>, transform_indices = @transform_3, window_bounds = array<i64: 128, 64>}, {pipeline_mode = #tpu.pipeline_mode<synchronous>, transform_indices = @transform_4, window_bounds = array<i64: 1, 64>}, {transform_indices = @transform_5, window_bounds = array<i64: 8, 64>}]} {
    %c0 = arith.constant 0 : index
    %c0_0 = arith.constant 0 : index
    %0 = vector.load %arg1[%c0, %c0_0] : memref<8x32xf32, #tpu.memory_space<vmem>>, vector<8x32xf32>
    %c0_1 = arith.constant 0 : index
    %c0_2 = arith.constant 0 : index
    %1 = vector.load %arg2[%c0_1, %c0_2] : memref<32x128xf32, #tpu.memory_space<vmem>>, vector<32x128xf32>
    %cst = arith.constant dense<0.000000e+00> : vector<8x128xf32>
    %2 = tpu.matmul %0, %1, %cst {dimension_numbers = #tpu.dot_dimension_numbers<[1], [0], [0], [1], [0, 0, 1, 1], [], []>} : vector<8x32xf32>, vector<32x128xf32>, vector<8x128xf32> -> vector<8x128xf32>
    %c0_3 = arith.constant 0 : index
    %c0_4 = arith.constant 0 : index
    %3 = vector.load %arg3[%c0_3, %c0_4] : memref<1x128xf32, #tpu.memory_space<vmem>>, vector<1x128xf32>
    %4 = vector.broadcast %3 : vector<1x128xf32> to vector<8x128xf32>
    %5 = arith.addf %2, %4 : vector<8x128xf32>
    %cst_5 = arith.constant 0.000000e+00 : f32
    %6 = vector.broadcast %cst_5 : f32 to vector<8x128xf32>
    %7 = arith.maximumf %5, %6 : vector<8x128xf32>
    %c0_6 = arith.constant 0 : index
    %c0_7 = arith.constant 0 : index
    %8 = vector.load %arg4[%c0_6, %c0_7] : memref<128x64xf32, #tpu.memory_space<vmem>>, vector<128x64xf32>
    %cst_8 = arith.constant dense<0.000000e+00> : vector<8x64xf32>
    %9 = tpu.matmul %7, %8, %cst_8 {dimension_numbers = #tpu.dot_dimension_numbers<[1], [0], [0], [1], [0, 0, 1, 1], [], []>} : vector<8x128xf32>, vector<128x64xf32>, vector<8x64xf32> -> vector<8x64xf32>
    %c0_9 = arith.constant 0 : index
    %c0_10 = arith.constant 0 : index
    %10 = vector.load %arg5[%c0_9, %c0_10] : memref<1x64xf32, #tpu.memory_space<vmem>>, vector<1x64xf32>
    %11 = vector.broadcast %10 : vector<1x64xf32> to vector<8x64xf32>
    %12 = arith.addf %9, %11 : vector<8x64xf32>
    %cst_11 = arith.constant 0.000000e+00 : f32
    %13 = vector.broadcast %cst_11 : f32 to vector<8x64xf32>
    %14 = arith.maximumf %12, %13 : vector<8x64xf32>
    %c0_12 = arith.constant 0 : index
    %c0_13 = arith.constant 0 : index
    %15 = vector.load %arg6[%c0_12, %c0_13] : memref<8x64xf32, #tpu.memory_space<vmem>>, vector<8x64xf32>
    tpu.vector_store %arg6[%c0_12, %c0_13], %14 {strides = array<i32>} : memref<8x64xf32, #tpu.memory_space<vmem>>, vector<8x64xf32>,
    return
  }
  func.func @transform_0(%arg0: i32) -> (i32, i32) {
    %c0_i32 = arith.constant 0 : i32
    %c0_i32_0 = arith.constant 0 : i32
    return %arg0, %c0_i32 : i32, i32
  }
  func.func @transform_1(%arg0: i32) -> (i32, i32) {
    %c0_i32 = arith.constant 0 : i32
    %c0_i32_0 = arith.constant 0 : i32
    %c0_i32_1 = arith.constant 0 : i32
    return %c0_i32, %c0_i32_0 : i32, i32
  }
  func.func @transform_2(%arg0: i32) -> (i32, i32) {
    %c0_i32 = arith.constant 0 : i32
    %c0_i32_0 = arith.constant 0 : i32
    %c0_i32_1 = arith.constant 0 : i32
    return %c0_i32, %c0_i32_0 : i32, i32
  }
  func.func @transform_3(%arg0: i32) -> (i32, i32) {
    %c0_i32 = arith.constant 0 : i32
    %c0_i32_0 = arith.constant 0 : i32
    %c0_i32_1 = arith.constant 0 : i32
    return %c0_i32, %c0_i32_0 : i32, i32
  }
  func.func @transform_4(%arg0: i32) -> (i32, i32) {
    %c0_i32 = arith.constant 0 : i32
    %c0_i32_0 = arith.constant 0 : i32
    %c0_i32_1 = arith.constant 0 : i32
    return %c0_i32, %c0_i32_0 : i32, i32
  }
  func.func @transform_5(%arg0: i32) -> (i32, i32) {
    %c0_i32 = arith.constant 0 : i32
    %c0_i32_0 = arith.constant 0 : i32
    return %arg0, %c0_i32 : i32, i32
  }
}

</mosaic_0001>

<llo_original>
// kernel: apply.1
$region0: #{apply.1}
  #allocation0 [shape = 'u32[]', space=smem, size = 0x4, offset = 0x4, fixed_abs, tag = 'smem constant byte address 0x4 - core index']
  #allocation1 [shape = 'u32[144,128]{1,0:T(1,128)}', space=vmem, size = 0x12000, scoped, tag = 'internal scratch']
  %s0 = inlined_call_operand.vmem [shape: f32[8,32], index: 0, kind: input, shape index: {}]
  %s1 = inlined_call_operand.hbm [shape: f32[32,128], index: 1, kind: input, shape index: {}]
  %s2 = inlined_call_operand.vmem [shape: f32[1,128], index: 2, kind: input, shape index: {}]
  %s3 = inlined_call_operand.hbm [shape: f32[128,64], index: 3, kind: input, shape index: {}]
  %s4 = inlined_call_operand.vmem [shape: f32[1,64], index: 4, kind: input, shape index: {}]
  %s5 = inlined_call_operand.vmem [shape: f32[8,64], index: 5, kind: output, shape index: {}]
  %s6 = sld [smem:[#allocation0]]
  $region38: #{apply.1} parent=0
    _
  %s8 = ssub.s32 1, %s6
  %s9 = scalar_select 0, %s8, %s6
  $region1: #{apply.1} parent=0
    #allocation2 [shape = 'u8[16384]{0}', space=vmem, size = 0x4000, scoped, tag = 'input window, operand 1, single buffered']
    #allocation3 [shape = 's32[1]{0}', space=sflag, size = 0x4, scoped, tag = 'scoped memory for apply.1']
    #allocation4 [shape = 'u8[65536]{0}', space=vmem, size = 0x10000, scoped, tag = 'input window, operand 3, single buffered']
    #allocation5 [shape = 's32[1]{0}', space=sflag, size = 0x4, scoped, tag = 'scoped memory for apply.1']
    %10 = vsyncpa [#allocation3], 0
    %11 = vsyncpa [#allocation5], 0
    // Predicated region
    $region2: #{apply.1} parent=1 // pred_check
      _
    $region3: #{apply.1} parent=1 // pred_check_branch
      %13 = sbr.rel (0) target = $region5
    $region4: #{apply.1} parent=1 // pred_region
      _
    $region5: #{apply.1} parent=1 // pred_fallthru
      _
    // Predicated region
    $region6: #{apply.1} parent=1 // pred_check
      _
    $region7: #{apply.1} parent=1 // pred_check_branch
      %15 = sbr.rel (0) target = $region9
    $region8: #{apply.1} parent=1 // pred_region
      %s17 = ssub.s32 512, 512
      %18 = vsyncadd [#allocation3], %s17
      %s19 = sshll.u32 [#allocation2], 4
      %s20 = int_to_ptr.vmem [resolvable:$true] %s19
      %25 = dma.hbm_to_vmem [thread:$0]  %s1, 512, %s20, [#allocation3], 128, 128, 8
    $region9: #{apply.1} parent=1 // pred_fallthru
      _
    // Predicated region
    $region10: #{apply.1} parent=1 // pred_check
      _
    $region11: #{apply.1} parent=1 // pred_check_branch
      %27 = sbr.rel (0) target = $region13
    $region12: #{apply.1} parent=1 // pred_region
      _
    $region13: #{apply.1} parent=1 // pred_fallthru
      _
    // Predicated region
    $region14: #{apply.1} parent=1 // pred_check
      _
    $region15: #{apply.1} parent=1 // pred_check_branch
      %29 = sbr.rel (0) target = $region17
    $region16: #{apply.1} parent=1 // pred_region
      %s31 = ssub.s32 2048, 2048
      %32 = vsyncadd [#allocation5], %s31
      %s33 = sshll.u32 [#allocation4], 4
      %s34 = int_to_ptr.vmem [resolvable:$true] %s33
      %39 = dma.hbm_to_vmem [thread:$0]  %s3, 2048, %s34, [#allocation5], 128, 128, 8
    $region17: #{apply.1} parent=1 // pred_fallthru
      _
    // Predicated region
    $region18: #{apply.1} parent=1 // pred_check
      _
    $region19: #{apply.1} parent=1 // pred_check_branch
      %41 = sbr.rel (0) target = $region21
    $region20: #{apply.1} parent=1 // pred_region
      _
    $region21: #{apply.1} parent=1 // pred_fallthru
      _
    // Predicated region
    $region22: #{apply.1} parent=1 // pred_check
      _
    $region23: #{apply.1} parent=1 // pred_check_branch
      %43 = sbr.rel (0) target = $region25
    $region24: #{apply.1} parent=1 // pred_region
      %44 = dma.done [#allocation3], 512
    $region25: #{apply.1} parent=1 // pred_fallthru
      _
    // Predicated region
    $region26: #{apply.1} parent=1 // pred_check
      _
    $region27: #{apply.1} parent=1 // pred_check_branch
      %46 = sbr.rel (0) target = $region29
    $region28: #{apply.1} parent=1 // pred_region
      %47 = dma.done [#allocation5], 2048
    $region29: #{apply.1} parent=1 // pred_fallthru
      _
    %v48 = vld [vmem:[%s0] sm:$0xff]
    %v49 = vld [vmem:[#allocation2] sm:$0xff]
    %v50 = vld [vmem:[#allocation2 + $0x8] sm:$0xff]
    %v51 = vld [vmem:[#allocation2 + $0x10] sm:$0xff]
    %v52 = vld [vmem:[#allocation2 + $0x18] sm:$0xff]
    %v53 = vld [vmem:[%s2] sm:$0x1]
    %v55 = vlaneseq
    %v56 = vshrl.u32 %v55, 7
    %v57 = vsub.s32 0, %v56
    %v58 = vrot.slane %v53, %v57
    %vm60 = vcmask 261120
    %v62 = vsel %vm60, %v48, 0
    %64 = vmatprep.subr.mxu0 0.0
    %65 = vmatpush1.msra.mxu0 %v49
    %66 = vmatprep.subr.mxu0 0.0
    %67 = vmatpush1.msra.mxu0 %v50
    %68 = vmatprep.subr.mxu0 0.0
    %69 = vmatpush1.msra.mxu0 %v51
    %70 = vmatprep.subr.mxu0 0.0
    %71 = vmatpush1.msra.mxu0 %v52
    %72 = vmatprep.subr.mxu0 0.0
    %73 = vmatpush1.msra.mxu0 0.0
    %74 = vmatprep.subr.mxu0 0.0
    %75 = vmatpush1.msra.mxu0 0.0
    %76 = vmatprep.subr.mxu0 0.0
    %77 = vmatpush1.msra.mxu0 0.0
    %78 = vmatprep.subr.mxu0 0.0
    %79 = vmatpush1.msra.mxu0 0.0
    %80 = vmatprep.subr.mxu0 0.0
    %81 = vmatpush1.msra.mxu0 0.0
    %82 = vmatprep.subr.mxu0 0.0
    %83 = vmatpush1.msra.mxu0 0.0
    %84 = vmatprep.subr.mxu0 0.0
    %85 = vmatpush1.msra.mxu0 0.0
    %86 = vmatprep.subr.mxu0 0.0
    %87 = vmatpush1.msra.mxu0 0.0
    %88 = vmatprep.subr.mxu0 0.0
    %89 = vmatpush1.msra.mxu0 0.0
    %90 = vmatprep.subr.mxu0 0.0
    %91 = vmatpush1.msra.mxu0 0.0
    %92 = vmatprep.subr.mxu0 0.0
    %93 = vmatpush1.msra.mxu0 0.0
    %94 = vmatprep.subr.mxu0 0.0
    %95 = vmatpush1.msra.mxu0 0.0
    %96 = vmatprep.subr.mxu0 0.0
    %97 = vmatpush1.msra.mxu0 0.0
    %98 = vmatprep.subr.mxu0 0.0
    %99 = vmatpush1.msra.mxu0 0.0
    %100 = vmatprep.subr.mxu0 0.0
    %101 = vmatpush1.msra.mxu0 0.0
    %102 = vmatprep.subr.mxu0 0.0
    %103 = vmatpush1.msra.mxu0 0.0
    %104 = vmatprep.subr.mxu0 0.0
    %105 = vmatpush1.msra.mxu0 0.0
    %106 = vmatprep.subr.mxu0 0.0
    %107 = vmatpush1.msra.mxu0 0.0
    %108 = vmatprep.subr.mxu0 0.0
    %109 = vmatpush1.msra.mxu0 0.0
    %110 = vmatprep.subr.mxu0 0.0
    %111 = vmatpush1.msra.mxu0 0.0
    %112 = vmatprep.subr.mxu0 0.0
    %113 = vmatpush1.msra.mxu0 0.0
    %114 = vmatprep.subr.mxu0 0.0
    %115 = vmatpush1.msra.mxu0 0.0
    %116 = vmatprep.subr.mxu0 0.0
    %117 = vmatpush1.msra.mxu0 0.0
    %118 = vmatprep.subr.mxu0 0.0
    %119 = vmatpush1.msra.mxu0 0.0
    %120 = vmatprep.subr.mxu0 0.0
    %121 = vmatpush1.msra.mxu0 0.0
    %122 = vmatprep.subr.mxu0 0.0
    %123 = vmatpush1.msra.mxu0 0.0
    %124 = vmatprep.subr.mxu0 0.0
    %125 = vmatpush1.msra.mxu0 0.0
    %126 = vmatprep.subr.mxu0 0.0
    %127 = vmatpush1.msra.mxu0 0.0
    %128 = vmatprep.mubr.f32.mxu0 0.0
    %129 = vmatmul.mubr.f32.gmra.mrb[0].mxu0 %v62
    %v130 = vpop.f32.mrb[0].mxu0
    %v131 = vadd.f32 %v58, %v130
    %v132 = vpop.f32.mrb[0].mxu0
    %133 = vdwg.mxu0
    %v134 = vmax.f32 %v131, 0.0
    %v135 = vld [vmem:[#allocation4] sm:$0xff]
    %v136 = vld [vmem:[#allocation4 + $0x8] sm:$0xff]
    %v137 = vld [vmem:[#allocation4 + $0x10] sm:$0xff]
    %v138 = vld [vmem:[#allocation4 + $0x18] sm:$0xff]
    %v139 = vld [vmem:[#allocation4 + $0x20] sm:$0xff]
    %v140 = vld [vmem:[#allocation4 + $0x28] sm:$0xff]
    %v141 = vld [vmem:[#allocation4 + $0x30] sm:$0xff]
    %v142 = vld [vmem:[#allocation4 + $0x38] sm:$0xff]
    %v143 = vld [vmem:[#allocation4 + $0x40] sm:$0xff]
    %v144 = vld [vmem:[#allocation4 + $0x48] sm:$0xff]
    %v145 = vld [vmem:[#allocation4 + $0x50] sm:$0xff]
    %v146 = vld [vmem:[#allocation4 + $0x58] sm:$0xff]
    %v147 = vld [vmem:[#allocation4 + $0x60] sm:$0xff]
    %v148 = vld [vmem:[#allocation4 + $0x68] sm:$0xff]
    %v149 = vld [vmem:[#allocation4 + $0x70] sm:$0xff]
    %v150 = vld [vmem:[#allocation4 + $0x78] sm:$0xff]
    %v151 = vld [vmem:[%s4] sm:$0x1]
    %v153 = vlaneseq
    %v154 = vshrl.u32 %v153, 7
    %v155 = vsub.s32 0, %v154
    %v156 = vrot.slane %v151, %v155
    %158 = vmatprep.subr.mxu0 0.0
    %159 = vmatpush1.msra.mxu0 %v135
    %160 = vmatprep.subr.mxu0 0.0
    %161 = vmatpush1.msra.mxu0 %v136
    %162 = vmatprep.subr.mxu0 0.0
    %163 = vmatpush1.msra.mxu0 %v137
    %164 = vmatprep.subr.mxu0 0.0
    %165 = vmatpush1.msra.mxu0 %v138
    %166 = vmatprep.subr.mxu0 0.0
    %167 = vmatpush1.msra.mxu0 %v139
    %168 = vmatprep.subr.mxu0 0.0
    %169 = vmatpush1.msra.mxu0 %v140
    %170 = vmatprep.subr.mxu0 0.0
    %171 = vmatpush1.msra.mxu0 %v141
    %172 = vmatprep.subr.mxu0 0.0
    %173 = vmatpush1.msra.mxu0 %v142
    %174 = vmatprep.subr.mxu0 0.0
    %175 = vmatpush1.msra.mxu0 %v143
    %176 = vmatprep.subr.mxu0 0.0
    %177 = vmatpush1.msra.mxu0 %v144
    %178 = vmatprep.subr.mxu0 0.0
    %179 = vmatpush1.msra.mxu0 %v145
    %180 = vmatprep.subr.mxu0 0.0
    %181 = vmatpush1.msra.mxu0 %v146
    %182 = vmatprep.subr.mxu0 0.0
    %183 = vmatpush1.msra.mxu0 %v147
    %184 = vmatprep.subr.mxu0 0.0
    %185 = vmatpush1.msra.mxu0 %v148
    %186 = vmatprep.subr.mxu0 0.0
    %187 = vmatpush1.msra.mxu0 %v149
    %188 = vmatprep.subr.mxu0 0.0
    %189 = vmatpush1.msra.mxu0 %v150
    %190 = vmatprep.subr.mxu0 0.0
    %191 = vmatpush1.msra.mxu0 0.0
    %192 = vmatprep.subr.mxu0 0.0
    %193 = vmatpush1.msra.mxu0 0.0
    %194 = vmatprep.subr.mxu0 0.0
    %195 = vmatpush1.msra.mxu0 0.0
    %196 = vmatprep.subr.mxu0 0.0
    %197 = vmatpush1.msra.mxu0 0.0
    %198 = vmatprep.subr.mxu0 0.0
    %199 = vmatpush1.msra.mxu0 0.0
    %200 = vmatprep.subr.mxu0 0.0
    %201 = vmatpush1.msra.mxu0 0.0
    %202 = vmatprep.subr.mxu0 0.0
    %203 = vmatpush1.msra.mxu0 0.0
    %204 = vmatprep.subr.mxu0 0.0
    %205 = vmatpush1.msra.mxu0 0.0
    %206 = vmatprep.subr.mxu0 0.0
    %207 = vmatpush1.msra.mxu0 0.0
    %208 = vmatprep.subr.mxu0 0.0
    %209 = vmatpush1.msra.mxu0 0.0
    %210 = vmatprep.subr.mxu0 0.0
    %211 = vmatpush1.msra.mxu0 0.0
    %212 = vmatprep.subr.mxu0 0.0
    %213 = vmatpush1.msra.mxu0 0.0
    %214 = vmatprep.subr.mxu0 0.0
    %215 = vmatpush1.msra.mxu0 0.0
    %216 = vmatprep.subr.mxu0 0.0
    %217 = vmatpush1.msra.mxu0 0.0
    %218 = vmatprep.subr.mxu0 0.0
    %219 = vmatpush1.msra.mxu0 0.0
    %220 = vmatprep.subr.mxu0 0.0
    %221 = vmatpush1.msra.mxu0 0.0
    %222 = vmatprep.mubr.f32.mxu0 0.0
    %223 = vmatmul.mubr.f32.gmra.mrb[0].mxu0 %v134
    %v224 = vpop.f32.mrb[0].mxu0
    %v225 = vadd.f32 %v156, %v224
    %v226 = vpop.f32.mrb[0].mxu0
    %227 = vdwg.mxu0
    %v228 = vmax.f32 %v225, 0.0
    %vm229 = vcmask 523264
    %230 = vst.msk [vmem:[%s5] sm:$0xff] %vm229, %v228
    // Predicated region
    $region30: #{apply.1} parent=1 // pred_check
      _
    $region31: #{apply.1} parent=1 // pred_check_branch
      %232 = sbr.rel (0) target = $region33
    $region32: #{apply.1} parent=1 // pred_region
      _
    $region33: #{apply.1} parent=1 // pred_fallthru
      _
    // Predicated region
    $region34: #{apply.1} parent=1 // pred_check
      _
    $region35: #{apply.1} parent=1 // pred_check_branch
      %234 = sbr.rel (0) target = $region37
    $region36: #{apply.1} parent=1 // pred_region
      _
    $region37: #{apply.1} parent=1 // pred_fallthru
      _
    %235 = vsyncpa [#allocation3], 1
    %236 = vsyncpa [#allocation5], 1

</llo_original>
